<compile_context>
chip_gen: v7x
topology: tpu7x:2x2x1
jax: 0.10.0
libtpu: 0.0.40
codegen_flags: <defaults>
</compile_context>

<pallas_src>
import functools

import jax
import jax.numpy as jnp
from jax.experimental import pallas as pl
from jax.experimental.pallas import tpu as pltpu


def _row_tile(B, N, *, itemsize=4, vmem_budget_bytes=4 << 20):
    """Rows per grid step.

    Multiple of 8 (sublane) unless B < 8 (then the full-dim exemption applies).
    Sized so ~6 live (TB, N) f32 tiles (double-buffered in/out + temps) stay
    well under the 32 MiB scoped-VMEM budget, which also fits v7x's smaller
    64 MiB physical VMEM.
    """
    max_rows = max(8, vmem_budget_bytes // max(1, N * itemsize))
    tb = min(B, max_rows)
    if B >= 8:
        tb = max(8, (tb // 8) * 8)
    return tb


# ----------------------------------------------------------------------------
# Inference path: one-hot(argmax(sample, axis=-1))
#   ret = argmax(sample, -1); zeros.scatter(-1, ret, 1)   (float32 one-hot)
# ----------------------------------------------------------------------------
def _onehot_argmax_kernel(x_ref, o_ref):
    x = x_ref[...].astype(jnp.float32)                    # cast in-register
    TB, N = x.shape
    mx = jnp.max(x, axis=-1, keepdims=True)               # [TB, 1]
    col = jax.lax.broadcasted_iota(jnp.int32, (TB, N), 1)
    # torch.argmax returns the FIRST maximal index -> min index among maxima.
    cand = jnp.where(x == mx, col, jnp.int32(N))
    amax = jnp.min(cand, axis=-1, keepdims=True)          # [TB, 1]
    o_ref[...] = (col == amax).astype(o_ref.dtype)


def onehot_argmax(sample):
    B, N = sample.shape
    tb = _row_tile(B, N)
    return pl.pallas_call(
        _onehot_argmax_kernel,
        out_shape=jax.ShapeDtypeStruct((B, N), jnp.float32),
        grid=(pl.cdiv(B, tb),),
        in_specs=[pl.BlockSpec((tb, N), lambda i: (i, 0))],
        out_specs=pl.BlockSpec((tb, N), lambda i: (i, 0)),
        compiler_params=pltpu.CompilerParams(
            dimension_semantics=("parallel",)),
    )(sample)


# ----------------------------------------------------------------------------
# Training path: F.gumbel_softmax(sample, tau) (soft, hard=False default)
#   g ~ Gumbel(0,1);  softmax((sample + g) / tau, axis=-1)
# ----------------------------------------------------------------------------
def _gumbel_softmax_kernel(x_ref, g_ref, o_ref, *, tau):
    x = x_ref[...].astype(jnp.float32)                    # [TB, N]
    g = g_ref[...].astype(jnp.float32)
    logits = (x + g) * (1.0 / tau)
    m = jnp.max(logits, axis=-1, keepdims=True)
    e = jnp.exp(logits - m)
    denom = jnp.sum(e, axis=-1, keepdims=True)
    o_ref[...] = (e / denom).astype(o_ref.dtype)


def gumbel_softmax(sample, tau, key):
    B, N = sample.shape
    # TODO(synk): draw Gumbel noise in-kernel with the hardware PRNG
    # (pltpu.prng_seed(seed + pl.program_id(0)) + pltpu.prng_random_bits) to
    # save this extra [B, N] HBM read; generated outside here so the kernel
    # also runs under interpret/CPU checking where 'prng_seed' has no lowering.
    gnoise = jax.random.gumbel(key, (B, N), dtype=jnp.float32)

    tb = _row_tile(B, N)
    kernel = functools.partial(_gumbel_softmax_kernel, tau=float(tau))
    return pl.pallas_call(
        kernel,
        out_shape=jax.ShapeDtypeStruct((B, N), jnp.float32),
        grid=(pl.cdiv(B, tb),),
        in_specs=[pl.BlockSpec((tb, N), lambda i: (i, 0)),
                  pl.BlockSpec((tb, N), lambda i: (i, 0))],
        out_specs=pl.BlockSpec((tb, N), lambda i: (i, 0)),
        compiler_params=pltpu.CompilerParams(
            dimension_semantics=("parallel",)),
    )(sample, gnoise)


# ----------------------------------------------------------------------------
# Module-equivalent wrapper (GUMBEL has no learned parameters).
# ----------------------------------------------------------------------------
class GUMBEL:
    def __init__(self, sample_num, hidden_size, is_train=False, gumbel_act=True):
        self.sample_num = sample_num
        self.hidden_size = hidden_size
        self.is_train = is_train
        self.gumbel_act = gumbel_act

    def __call__(self, sample, training=None, tau=None, key=None):
        if training:
            if key is None:
                key = jax.random.PRNGKey(0)
            # GumbelSoftmax.forward defaults tau=0.05 (note: differs from
            # F.gumbel_softmax's own default of 1.0; preserved from the spec).
            return gumbel_softmax(sample, 0.05 if tau is None else tau, key)
        # eval path: argmax -> scatter one-hot (float32)
        return onehot_argmax(sample)


if __name__ == "__main__":
    key = jax.random.PRNGKey(0)
    k_sample, k_noise = jax.random.split(key)

    B, sample_num, hidden_size = 8, 128, 32
    sample = jax.random.normal(k_sample, (B, sample_num), dtype=jnp.float32)

    mod = GUMBEL(sample_num, hidden_size)

    # Inference path (training falsy): one-hot of argmax.
    out_eval = mod(sample)
    # Training path: gumbel-softmax with tau.
    out_train = mod(sample, training=True, tau=0.5, key=k_noise)

    jax.block_until_ready((out_eval, out_train))

    # Sanity checks against pure-JAX references.
    ref_eval = jax.nn.one_hot(jnp.argmax(sample, axis=-1), sample_num,
                              dtype=jnp.float32)
    assert out_eval.shape == (B, sample_num)
    assert jnp.allclose(out_eval, ref_eval), "argmax one-hot mismatch"

    ref_train = jax.nn.softmax(
        (sample + jax.random.gumbel(k_noise, (B, sample_num),
                                    dtype=jnp.float32)) / 0.5, axis=-1)
    assert out_train.shape == (B, sample_num)
    assert jnp.allclose(out_train, ref_train, atol=1e-5), \
        "gumbel-softmax mismatch vs reference"
    assert jnp.allclose(jnp.sum(out_train, axis=-1), 1.0, atol=1e-3)
    assert bool(jnp.all(out_train >= 0.0))

    print("KERNEL_OK")
</pallas_src>

<mosaic_0001>
module attributes {stable_mosaic.version = 11 : i64} {
  func.func @_onehot_argmax_kernel(%arg0: i32, %arg1: memref<8x128xf32, #tpu.memory_space<vmem>>, %arg2: memref<8x128xf32, #tpu.memory_space<vmem>>) attributes {dimension_semantics = [#tpu.dimension_semantics<parallel>], iteration_bounds = array<i64: 1>, scalar_prefetch = 0 : i64, scratch_operands = 0 : i64, tpu.core_type = #tpu.core_type<tc>, window_params = [{transform_indices = @transform_0, window_bounds = array<i64: 8, 128>}, {transform_indices = @transform_1, window_bounds = array<i64: 8, 128>}]} {
    %c0 = arith.constant 0 : index
    %c0_0 = arith.constant 0 : index
    %0 = vector.load %arg1[%c0, %c0_0] : memref<8x128xf32, #tpu.memory_space<vmem>>, vector<8x128xf32>
    %cst = arith.constant dense<0xFF800000> : vector<8xf32>
    %1 = vector.multi_reduction <maximumf>, %0, %cst [1] : vector<8x128xf32> to vector<8xf32>
    %2 = vector.shape_cast %1 : vector<8xf32> to vector<8x1xf32>
    %3 = tpu.iota {dimensions = array<i32: 1>} : vector<8x128xi32>
    %4 = vector.broadcast %2 : vector<8x1xf32> to vector<8x128xf32>
    %5 = arith.cmpf oeq, %0, %4 : vector<8x128xf32>
    %c128_i32 = arith.constant 128 : i32
    %6 = vector.broadcast %c128_i32 : i32 to vector<8x128xi32>
    %7 = arith.select %5, %3, %6 : vector<8x128xi1>, vector<8x128xi32>
    %cst_1 = arith.constant dense<2147483647> : vector<8xi32>
    %8 = vector.multi_reduction <minsi>, %7, %cst_1 [1] : vector<8x128xi32> to vector<8xi32>
    %9 = vector.shape_cast %8 : vector<8xi32> to vector<8x1xi32>
    %10 = vector.broadcast %9 : vector<8x1xi32> to vector<8x128xi32>
    %11 = arith.cmpi eq, %3, %10 : vector<8x128xi32>
    %12 = arith.extui %11 : vector<8x128xi1> to vector<8x128xi32>
    %13 = arith.sitofp %12 : vector<8x128xi32> to vector<8x128xf32>
    %c0_2 = arith.constant 0 : index
    %c0_3 = arith.constant 0 : index
    %14 = vector.load %arg2[%c0_2, %c0_3] : memref<8x128xf32, #tpu.memory_space<vmem>>, vector<8x128xf32>
    tpu.vector_store %arg2[%c0_2, %c0_3], %13 {strides = array<i32>} : memref<8x128xf32, #tpu.memory_space<vmem>>, vector<8x128xf32>,
    return
  }
  func.func @transform_0(%arg0: i32) -> (i32, i32) {
    %c0_i32 = arith.constant 0 : i32
    %c0_i32_0 = arith.constant 0 : i32
    return %arg0, %c0_i32 : i32, i32
  }
  func.func @transform_1(%arg0: i32) -> (i32, i32) {
    %c0_i32 = arith.constant 0 : i32
    %c0_i32_0 = arith.constant 0 : i32
    return %arg0, %c0_i32 : i32, i32
  }
}

</mosaic_0001>

<llo_original>
// kernel: tpu_custom_call.1
$region0: #{tpu_custom_call.1}
  #allocation0 [shape = 'u32[]', space=smem, size = 0x4, offset = 0x4, fixed_abs, tag = 'smem constant byte address 0x4 - core index']
  #allocation1 [shape = 'u32[144,128]{1,0:T(1,128)}', space=vmem, size = 0x12000, scoped, tag = 'internal scratch']
  %s0 = inlined_call_operand.hbm [shape: f32[8,128], index: 0, kind: input, shape index: {}]
  %s1 = inlined_call_operand.hbm [shape: f32[8,128], index: 1, kind: output, shape index: {}]
  %s2 = sld [smem:[#allocation0]]
  $region18: #{tpu_custom_call.1} parent=0
    _
  %s4 = ssub.s32 1, %s2
  %s5 = scalar_select 0, %s4, %s2
  $region1: #{tpu_custom_call.1} parent=0
    #allocation2 [shape = 'u8[4096]{0}', space=vmem, size = 0x1000, scoped, tag = 'input window, operand 0, single buffered']
    #allocation3 [shape = 's32[1]{0}', space=sflag, size = 0x4, scoped, tag = 'scoped memory for tpu_custom_call.1']
    #allocation4 [shape = 's32[1]{0}', space=sflag, size = 0x4, scoped, tag = 'scoped memory for tpu_custom_call.1']
    #allocation5 [shape = 'u8[4096]{0}', space=vmem, size = 0x1000, scoped, tag = 'output window, operand 0, single buffered']
    %6 = vsyncpa [#allocation3], 0
    %7 = vsyncpa [#allocation4], 0
    // Predicated region
    $region2: #{tpu_custom_call.1} parent=1 // pred_check
      _
    $region3: #{tpu_custom_call.1} parent=1 // pred_check_branch
      %9 = sbr.rel (0) target = $region5
    $region4: #{tpu_custom_call.1} parent=1 // pred_region
      %s11 = ssub.s32 128, 128
      %12 = vsyncadd [#allocation3], %s11
      %s14 = sshll.u32 [#allocation2], 4
      %s15 = int_to_ptr.vmem [resolvable:$true] %s14
      %17 = dma.hbm_to_vmem [thread:$0]  %s0, 128, %s15, [#allocation3]
    $region5: #{tpu_custom_call.1} parent=1 // pred_fallthru
      _
    // Predicated region
    $region6: #{tpu_custom_call.1} parent=1 // pred_check
      _
    $region7: #{tpu_custom_call.1} parent=1 // pred_check_branch
      %19 = sbr.rel (0) target = $region9
    $region8: #{tpu_custom_call.1} parent=1 // pred_region
      %20 = dma.done [#allocation3], 128
    $region9: #{tpu_custom_call.1} parent=1 // pred_fallthru
      _
    %v21 = vld [vmem:[#allocation2] sm:$0xff]
    %22 = vmax.xlane.f32.xlu0 %v21
    %v23 = vpop.xlane.xlu0 %22
    %v24 = vlaneseq
    %v25 = vand.u32 %v24, 127
    %vm26 = vcmp.eq.f32.partialorder %v21, %v23
    %v27 = vsel %vm26, %v25, 128
    %v28 = vand.u32 %v27, 65535
    %v29 = vshra.s32 %v27, 16
    %v30 = vcvt.s32.f32 %v28
    %v31 = vcvt.s32.f32 %v29
    %32 = vmin.xlane.f32.xlu0 %v31
    %v33 = vpop.xlane.xlu0 %32
    %vm34 = vcmp.eq.f32.partialorder %v31, %v33
    %v35 = vsel %vm34, %v30, inf
    %36 = vmin.xlane.f32.xlu0 %v35
    %v37 = vpop.xlane.xlu0 %36
    %v38 = vcvt.f32.s32 %v37
    %v39 = vcvt.f32.s32 %v33
    %v40 = vshll.u32 %v39, 16
    %v41 = vadd.s32 %v40, %v38
    %vm42 = vcmp.eq.s32.totalorder %v25, %v41
    %v43 = vsel %vm42, 1, 0
    %v44 = vcvt.s32.f32 %v43
    %45 = vst [vmem:[#allocation5] sm:$0xff] %v44
    // Predicated region
    $region10: #{tpu_custom_call.1} parent=1 // pred_check
      _
    $region11: #{tpu_custom_call.1} parent=1 // pred_check_branch
      %47 = sbr.rel (0) target = $region13
    $region12: #{tpu_custom_call.1} parent=1 // pred_region
      %s49 = ssub.s32 128, 128
      %50 = vsyncadd [#allocation4], %s49
      %s52 = sshll.u32 [#allocation5], 4
      %s53 = int_to_ptr.vmem [resolvable:$true] %s52
      %55 = dma.vmem_to_hbm [thread:$0]  %s53, 128, %s1, [#allocation4]
    $region13: #{tpu_custom_call.1} parent=1 // pred_fallthru
      _
    // Predicated region
    $region14: #{tpu_custom_call.1} parent=1 // pred_check
      _
    $region15: #{tpu_custom_call.1} parent=1 // pred_check_branch
      %57 = sbr.rel (0) target = $region17
    $region16: #{tpu_custom_call.1} parent=1 // pred_region
      %58 = dma.done [#allocation4], 128
    $region17: #{tpu_custom_call.1} parent=1 // pred_fallthru
      _
    %59 = vsyncpa [#allocation3], 1
    %60 = vsyncpa [#allocation4], 1

</llo_original>
